<compile_context>
chip_gen: v5e
topology: v5e:2x2
jax: 0.10.0
libtpu: 0.0.40
codegen_flags: <defaults>
</compile_context>

<pallas_src>
import functools

import jax
import jax.numpy as jnp
from jax.experimental import pallas as pl
from jax.experimental.pallas import tpu as pltpu

_LANE = 128      # lane width (last dim)
_SUBLANE = 8     # sublane width (second-last dim)


def _round_up(n, m):
    return ((n + m - 1) // m) * m


def _hidden_activation(y, name):
    # y is f32; keep elementwise math in f32 (v5e has no bf16 VPU/EUP path).
    if name == "relu":
        return jnp.maximum(y, 0.0)
    if name == "tanh":
        return jnp.tanh(y)
    if name == "sigmoid":
        return pl.reciprocal(1.0 + jnp.exp(-y), approx=True)
    if name == "gelu":
        return jax.nn.gelu(y)
    raise ValueError(f"unknown activation {name!r}")


def _mlp_kernel(*refs, num_layers, activation, classification):
    """Fused MLP on one batch tile.

    refs = (x_ref, w0, b0, w1, b1, ..., w_{L-1}, b_{L-1}, o_ref)
      x_ref : (Bt, IN_pad)        f32
      w_i   : (IN_pad, OUT_pad)   bf16 (pre-transposed, zero padded)
      b_i   : (1, OUT_pad)        f32
      o_ref : (Bt, OUT_pad_last)  f32
    """
    x_ref = refs[0]
    o_ref = refs[-1]

    h = x_ref[...].astype(jnp.bfloat16)            # bf16 MXU input
    for i in range(num_layers):                    # static unrolled layer loop
        w = refs[1 + 2 * i][...]                   # (IN_pad, OUT_pad) bf16
        b = refs[2 + 2 * i][...]                   # (1, OUT_pad) f32
        y = jnp.dot(h, w, preferred_element_type=jnp.float32) + b   # f32 accum
        if i < num_layers - 1:
            y = _hidden_activation(y, activation)
            h = y.astype(jnp.bfloat16)             # bf16 for next MXU push
        else:
            if classification:
                # sigmoid = 1 / (1 + exp(-y)); approx reciprocal -> EUP slot
                y = pl.reciprocal(1.0 + jnp.exp(-y), approx=True)
            o_ref[...] = y.astype(o_ref.dtype)     # lane-dense (padded) store


@functools.partial(jax.jit,
                   static_argnames=("activation", "classification", "output_size"))
def _mlp_forward(x, params, *, activation, classification, output_size):
    B, f_in = x.shape
    num_layers = len(params)
    in_pad = params[0][0].shape[0]
    out_pad = params[-1][0].shape[1]

    # Batch padding + batch-blocked grid (parallel axis -> both TCs on v7x).
    block_b = 256
    b_pad = _round_up(max(B, _SUBLANE), _SUBLANE)
    if b_pad <= block_b:
        block_b = b_pad
    else:
        b_pad = _round_up(b_pad, block_b)
    grid = (b_pad // block_b,)

    # Zero-pad input to (b_pad, in_pad); padded weight rows are zero so the
    # extra input columns contribute nothing.
    x_p = jnp.zeros((b_pad, in_pad), jnp.float32).at[:B, :f_in].set(
        x.astype(jnp.float32))

    flat_params = [a for wb in params for a in wb]

    in_specs = [pl.BlockSpec((block_b, in_pad), lambda i: (i, 0))]
    for (w, b) in params:
        # Constant index_map -> weights/biases stay VMEM-resident across the
        # batch grid (no re-DMA per batch tile).
        in_specs.append(pl.BlockSpec(w.shape, lambda i: (0, 0)))
        in_specs.append(pl.BlockSpec(b.shape, lambda i: (0, 0)))

    kernel = functools.partial(
        _mlp_kernel,
        num_layers=num_layers,
        activation=activation,
        classification=classification,
    )

    out = pl.pallas_call(
        kernel,
        out_shape=jax.ShapeDtypeStruct((b_pad, out_pad), jnp.float32),
        grid=grid,
        in_specs=in_specs,
        out_specs=pl.BlockSpec((block_b, out_pad), lambda i: (i, 0)),
        compiler_params=pltpu.CompilerParams(
            dimension_semantics=("parallel",)),
    )(x_p, *flat_params)

    return out[:B, :output_size]


class CustomNNPallas:
    """JAX/Pallas port of the PyTorch CustomNN module (single fused kernel)."""

    def __init__(self, input_size, hidden_size, output_size, num_hidden_layers,
                 activation="relu", classification=True, key=None):
        self.activation = activation
        self.classification = classification
        self.output_size = output_size
        if key is None:
            key = jax.random.PRNGKey(0)

        dims = [(input_size, hidden_size)]
        dims += [(hidden_size, hidden_size) for _ in range(num_hidden_layers - 1)]
        dims += [(hidden_size, output_size)]

        params = []
        for (fan_in, fan_out) in dims:
            key, kw, kb = jax.random.split(key, 3)
            bound = 1.0 / jnp.sqrt(jnp.float32(fan_in))  # nn.Linear default range
            # PyTorch layout (out, in); store transposed + zero-padded to
            # lane-aligned dims, weights in bf16 / bias in f32.
            w = jax.random.uniform(kw, (fan_out, fan_in), jnp.float32, -bound, bound)
            b = jax.random.uniform(kb, (fan_out,), jnp.float32, -bound, bound)
            in_pad = _round_up(fan_in, _LANE)
            out_pad = _round_up(fan_out, _LANE)
            w_t = jnp.zeros((in_pad, out_pad), jnp.float32).at[:fan_in, :fan_out].set(w.T)
            b_p = jnp.zeros((1, out_pad), jnp.float32).at[0, :fan_out].set(b)
            params.append((w_t.astype(jnp.bfloat16), b_p))
        self.params = tuple(params)

    def __call__(self, x):
        return _mlp_forward(
            x, self.params,
            activation=self.activation,
            classification=self.classification,
            output_size=self.output_size,
        )


def _reference_forward(model, x):
    """Pure-JAX reference using the same (bf16-rounded, padded) parameters."""
    in_pad = model.params[0][0].shape[0]
    h = jnp.zeros((x.shape[0], in_pad), jnp.float32).at[:, :x.shape[1]].set(x)
    n = len(model.params)
    for i, (w, b) in enumerate(model.params):
        y = h @ w.astype(jnp.float32) + b
        if i < n - 1:
            assert model.activation == "relu"
            h = jnp.maximum(y, 0.0)
        else:
            if model.classification:
                y = jax.nn.sigmoid(y)
            return y[:, :model.output_size]


if __name__ == "__main__":
    key = jax.random.PRNGKey(0)
    key, kx = jax.random.split(key)

    batch = 8
    input_size = 32
    hidden_size = 32
    output_size = 8
    num_hidden_layers = 3

    model = CustomNNPallas(
        input_size=input_size,
        hidden_size=hidden_size,
        output_size=output_size,
        num_hidden_layers=num_hidden_layers,
        activation="relu",
        classification=True,
        key=key,
    )

    x = jax.random.normal(kx, (batch, input_size), jnp.float32)
    out = jax.block_until_ready(model(x))

    assert out.shape == (batch, output_size)
    assert bool(jnp.all(jnp.isfinite(out)))
    assert bool(jnp.all((out >= 0.0) & (out <= 1.0)))  # sigmoid range

    ref = _reference_forward(model, x)
    assert bool(jnp.allclose(out, ref, atol=2e-2, rtol=2e-2)), (
        float(jnp.max(jnp.abs(out - ref))))

    print("KERNEL_OK")
</pallas_src>

<mosaic_0001>
module attributes {stable_mosaic.version = 11 : i64} {
  func.func @_mlp_kernel(%arg0: i32, %arg1: memref<8x128xf32, #tpu.memory_space<vmem>>, %arg2: memref<128x128xbf16, #tpu.memory_space<vmem>>, %arg3: memref<1x128xf32, #tpu.memory_space<vmem>>, %arg4: memref<128x128xbf16, #tpu.memory_space<vmem>>, %arg5: memref<1x128xf32, #tpu.memory_space<vmem>>, %arg6: memref<128x128xbf16, #tpu.memory_space<vmem>>, %arg7: memref<1x128xf32, #tpu.memory_space<vmem>>, %arg8: memref<128x128xbf16, #tpu.memory_space<vmem>>, %arg9: memref<1x128xf32, #tpu.memory_space<vmem>>, %arg10: memref<8x128xf32, #tpu.memory_space<vmem>>) attributes {dimension_semantics = [#tpu.dimension_semantics<parallel>], iteration_bounds = array<i64: 1>, scalar_prefetch = 0 : i64, scratch_operands = 0 : i64, tpu.core_type = #tpu.core_type<tc>, window_params = [{transform_indices = @transform_0, window_bounds = array<i64: 8, 128>}, {pipeline_mode = #tpu.pipeline_mode<synchronous>, transform_indices = @transform_1, window_bounds = array<i64: 128, 128>}, {pipeline_mode = #tpu.pipeline_mode<synchronous>, transform_indices = @transform_2, window_bounds = array<i64: 1, 128>}, {pipeline_mode = #tpu.pipeline_mode<synchronous>, transform_indices = @transform_3, window_bounds = array<i64: 128, 128>}, {pipeline_mode = #tpu.pipeline_mode<synchronous>, transform_indices = @transform_4, window_bounds = array<i64: 1, 128>}, {pipeline_mode = #tpu.pipeline_mode<synchronous>, transform_indices = @transform_5, window_bounds = array<i64: 128, 128>}, {pipeline_mode = #tpu.pipeline_mode<synchronous>, transform_indices = @transform_6, window_bounds = array<i64: 1, 128>}, {pipeline_mode = #tpu.pipeline_mode<synchronous>, transform_indices = @transform_7, window_bounds = array<i64: 128, 128>}, {pipeline_mode = #tpu.pipeline_mode<synchronous>, transform_indices = @transform_8, window_bounds = array<i64: 1, 128>}, {transform_indices = @transform_9, window_bounds = array<i64: 8, 128>}]} {
    %c0 = arith.constant 0 : index
    %c0_0 = arith.constant 0 : index
    %0 = vector.load %arg1[%c0, %c0_0] : memref<8x128xf32, #tpu.memory_space<vmem>>, vector<8x128xf32>
    %1 = arith.truncf %0 : vector<8x128xf32> to vector<8x128xbf16>
    %c0_1 = arith.constant 0 : index
    %c0_2 = arith.constant 0 : index
    %2 = vector.load %arg2[%c0_1, %c0_2] : memref<128x128xbf16, #tpu.memory_space<vmem>>, vector<128x128xbf16>
    %c0_3 = arith.constant 0 : index
    %c0_4 = arith.constant 0 : index
    %3 = vector.load %arg3[%c0_3, %c0_4] : memref<1x128xf32, #tpu.memory_space<vmem>>, vector<1x128xf32>
    %cst = arith.constant dense<0.000000e+00> : vector<8x128xf32>
    %4 = tpu.matmul %1, %2, %cst {dimension_numbers = #tpu.dot_dimension_numbers<[1], [0], [0], [1], [0, 0, 1, 1], [], []>} : vector<8x128xbf16>, vector<128x128xbf16>, vector<8x128xf32> -> vector<8x128xf32>
    %5 = vector.broadcast %3 : vector<1x128xf32> to vector<8x128xf32>
    %6 = arith.addf %4, %5 : vector<8x128xf32>
    %cst_5 = arith.constant 0.000000e+00 : f32
    %7 = vector.broadcast %cst_5 : f32 to vector<8x128xf32>
    %8 = arith.maximumf %6, %7 : vector<8x128xf32>
    %9 = arith.truncf %8 : vector<8x128xf32> to vector<8x128xbf16>
    %c0_6 = arith.constant 0 : index
    %c0_7 = arith.constant 0 : index
    %10 = vector.load %arg4[%c0_6, %c0_7] : memref<128x128xbf16, #tpu.memory_space<vmem>>, vector<128x128xbf16>
    %c0_8 = arith.constant 0 : index
    %c0_9 = arith.constant 0 : index
    %11 = vector.load %arg5[%c0_8, %c0_9] : memref<1x128xf32, #tpu.memory_space<vmem>>, vector<1x128xf32>
    %cst_10 = arith.constant dense<0.000000e+00> : vector<8x128xf32>
    %12 = tpu.matmul %9, %10, %cst_10 {dimension_numbers = #tpu.dot_dimension_numbers<[1], [0], [0], [1], [0, 0, 1, 1], [], []>} : vector<8x128xbf16>, vector<128x128xbf16>, vector<8x128xf32> -> vector<8x128xf32>
    %13 = vector.broadcast %11 : vector<1x128xf32> to vector<8x128xf32>
    %14 = arith.addf %12, %13 : vector<8x128xf32>
    %cst_11 = arith.constant 0.000000e+00 : f32
    %15 = vector.broadcast %cst_11 : f32 to vector<8x128xf32>
    %16 = arith.maximumf %14, %15 : vector<8x128xf32>
    %17 = arith.truncf %16 : vector<8x128xf32> to vector<8x128xbf16>
    %c0_12 = arith.constant 0 : index
    %c0_13 = arith.constant 0 : index
    %18 = vector.load %arg6[%c0_12, %c0_13] : memref<128x128xbf16, #tpu.memory_space<vmem>>, vector<128x128xbf16>
    %c0_14 = arith.constant 0 : index
    %c0_15 = arith.constant 0 : index
    %19 = vector.load %arg7[%c0_14, %c0_15] : memref<1x128xf32, #tpu.memory_space<vmem>>, vector<1x128xf32>
    %cst_16 = arith.constant dense<0.000000e+00> : vector<8x128xf32>
    %20 = tpu.matmul %17, %18, %cst_16 {dimension_numbers = #tpu.dot_dimension_numbers<[1], [0], [0], [1], [0, 0, 1, 1], [], []>} : vector<8x128xbf16>, vector<128x128xbf16>, vector<8x128xf32> -> vector<8x128xf32>
    %21 = vector.broadcast %19 : vector<1x128xf32> to vector<8x128xf32>
    %22 = arith.addf %20, %21 : vector<8x128xf32>
    %cst_17 = arith.constant 0.000000e+00 : f32
    %23 = vector.broadcast %cst_17 : f32 to vector<8x128xf32>
    %24 = arith.maximumf %22, %23 : vector<8x128xf32>
    %25 = arith.truncf %24 : vector<8x128xf32> to vector<8x128xbf16>
    %c0_18 = arith.constant 0 : index
    %c0_19 = arith.constant 0 : index
    %26 = vector.load %arg8[%c0_18, %c0_19] : memref<128x128xbf16, #tpu.memory_space<vmem>>, vector<128x128xbf16>
    %c0_20 = arith.constant 0 : index
    %c0_21 = arith.constant 0 : index
    %27 = vector.load %arg9[%c0_20, %c0_21] : memref<1x128xf32, #tpu.memory_space<vmem>>, vector<1x128xf32>
    %cst_22 = arith.constant dense<0.000000e+00> : vector<8x128xf32>
    %28 = tpu.matmul %25, %26, %cst_22 {dimension_numbers = #tpu.dot_dimension_numbers<[1], [0], [0], [1], [0, 0, 1, 1], [], []>} : vector<8x128xbf16>, vector<128x128xbf16>, vector<8x128xf32> -> vector<8x128xf32>
    %29 = vector.broadcast %27 : vector<1x128xf32> to vector<8x128xf32>
    %30 = arith.addf %28, %29 : vector<8x128xf32>
    %cst_23 = arith.constant 0.000000e+00 : f32
    %31 = vector.broadcast %cst_23 : f32 to vector<8x128xf32>
    %32 = arith.subf %31, %30 : vector<8x128xf32>
    %33 = math.exp %32 : vector<8x128xf32>
    %cst_24 = arith.constant 1.000000e+00 : f32
    %34 = vector.broadcast %cst_24 : f32 to vector<8x128xf32>
    %35 = arith.addf %34, %33 : vector<8x128xf32>
    %36 = tpu.reciprocal %35 {approx = true} : vector<8x128xf32> -> vector<8x128xf32>
    %c0_25 = arith.constant 0 : index
    %c0_26 = arith.constant 0 : index
    %37 = vector.load %arg10[%c0_25, %c0_26] : memref<8x128xf32, #tpu.memory_space<vmem>>, vector<8x128xf32>
    tpu.vector_store %arg10[%c0_25, %c0_26], %36 {strides = array<i32>} : memref<8x128xf32, #tpu.memory_space<vmem>>, vector<8x128xf32>,
    return
  }
  func.func @transform_0(%arg0: i32) -> (i32, i32) {
    %c0_i32 = arith.constant 0 : i32
    %c0_i32_0 = arith.constant 0 : i32
    return %arg0, %c0_i32 : i32, i32
  }
  func.func @transform_1(%arg0: i32) -> (i32, i32) {
    %c0_i32 = arith.constant 0 : i32
    %c0_i32_0 = arith.constant 0 : i32
    %c0_i32_1 = arith.constant 0 : i32
    return %c0_i32, %c0_i32_0 : i32, i32
  }
  func.func @transform_2(%arg0: i32) -> (i32, i32) {
    %c0_i32 = arith.constant 0 : i32
    %c0_i32_0 = arith.constant 0 : i32
    %c0_i32_1 = arith.constant 0 : i32
    return %c0_i32, %c0_i32_0 : i32, i32
  }
  func.func @transform_3(%arg0: i32) -> (i32, i32) {
    %c0_i32 = arith.constant 0 : i32
    %c0_i32_0 = arith.constant 0 : i32
    %c0_i32_1 = arith.constant 0 : i32
    return %c0_i32, %c0_i32_0 : i32, i32
  }
  func.func @transform_4(%arg0: i32) -> (i32, i32) {
    %c0_i32 = arith.constant 0 : i32
    %c0_i32_0 = arith.constant 0 : i32
    %c0_i32_1 = arith.constant 0 : i32
    return %c0_i32, %c0_i32_0 : i32, i32
  }
  func.func @transform_5(%arg0: i32) -> (i32, i32) {
    %c0_i32 = arith.constant 0 : i32
    %c0_i32_0 = arith.constant 0 : i32
    %c0_i32_1 = arith.constant 0 : i32
    return %c0_i32, %c0_i32_0 : i32, i32
  }
  func.func @transform_6(%arg0: i32) -> (i32, i32) {
    %c0_i32 = arith.constant 0 : i32
    %c0_i32_0 = arith.constant 0 : i32
    %c0_i32_1 = arith.constant 0 : i32
    return %c0_i32, %c0_i32_0 : i32, i32
  }
  func.func @transform_7(%arg0: i32) -> (i32, i32) {
    %c0_i32 = arith.constant 0 : i32
    %c0_i32_0 = arith.constant 0 : i32
    %c0_i32_1 = arith.constant 0 : i32
    return %c0_i32, %c0_i32_0 : i32, i32
  }
  func.func @transform_8(%arg0: i32) -> (i32, i32) {
    %c0_i32 = arith.constant 0 : i32
    %c0_i32_0 = arith.constant 0 : i32
    %c0_i32_1 = arith.constant 0 : i32
    return %c0_i32, %c0_i32_0 : i32, i32
  }
  func.func @transform_9(%arg0: i32) -> (i32, i32) {
    %c0_i32 = arith.constant 0 : i32
    %c0_i32_0 = arith.constant 0 : i32
    return %arg0, %c0_i32 : i32, i32
  }
}

</mosaic_0001>

<llo_original>
// kernel: _mlp_forward.1
$region0: #{_mlp_forward.1}
  #allocation0 [shape = 'u32[]', space=smem, size = 0x4, offset = 0x4, fixed_abs, tag = 'smem constant byte address 0x4 - core index']
  #allocation1 [shape = 'u32[72,128]{1,0:T(1,128)}', space=vmem, size = 0x9000, scoped, tag = 'internal scratch']
  %s0 = inlined_call_operand.vmem [shape: f32[8,128], index: 0, kind: input, shape index: {}]
  %s1 = inlined_call_operand.hbm [shape: bf16[128,128], index: 1, kind: input, shape index: {}]
  %s2 = inlined_call_operand.vmem [shape: f32[1,128], index: 2, kind: input, shape index: {}]
  %s3 = inlined_call_operand.hbm [shape: bf16[128,128], index: 3, kind: input, shape index: {}]
  %s4 = inlined_call_operand.vmem [shape: f32[1,128], index: 4, kind: input, shape index: {}]
  %s5 = inlined_call_operand.hbm [shape: bf16[128,128], index: 5, kind: input, shape index: {}]
  %s6 = inlined_call_operand.vmem [shape: f32[1,128], index: 6, kind: input, shape index: {}]
  %s7 = inlined_call_operand.hbm [shape: bf16[128,128], index: 7, kind: input, shape index: {}]
  %s8 = inlined_call_operand.vmem [shape: f32[1,128], index: 8, kind: input, shape index: {}]
  %s9 = inlined_call_operand.hbm [shape: f32[8,128], index: 9, kind: output, shape index: {}]
  %s10 = sld [smem:[#allocation0]]
  $region62: #{_mlp_forward.1} parent=0
    _
  %s12 = ssub.s32 1, %s10
  %s13 = scalar_select 0, %s12, %s10
  $region1: #{_mlp_forward.1} parent=0
    #allocation2 [shape = 'u8[32768]{0}', space=vmem, size = 0x8000, scoped, tag = 'input window, operand 1, single buffered']
    #allocation3 [shape = 's32[1]{0}', space=sflag, size = 0x4, scoped, tag = 'scoped memory for _mlp_forward.1']
    #allocation4 [shape = 's32[1]{0}', space=sflag, size = 0x4, scoped, tag = 'scoped memory for _mlp_forward.1']
    #allocation5 [shape = 'u8[32768]{0}', space=vmem, size = 0x8000, scoped, tag = 'input window, operand 3, single buffered']
    #allocation6 [shape = 's32[1]{0}', space=sflag, size = 0x4, scoped, tag = 'scoped memory for _mlp_forward.1']
    #allocation7 [shape = 'u8[32768]{0}', space=vmem, size = 0x8000, scoped, tag = 'input window, operand 5, single buffered']
    #allocation8 [shape = 'u8[32768]{0}', space=vmem, size = 0x8000, scoped, tag = 'input window, operand 7, single buffered']
    #allocation9 [shape = 's32[1]{0}', space=sflag, size = 0x4, scoped, tag = 'scoped memory for _mlp_forward.1']
    #allocation10 [shape = 'u8[4096]{0}', space=vmem, size = 0x1000, scoped, tag = 'output window, operand 0, single buffered']
    %14 = vsyncpa [#allocation3], 0
    %15 = vsyncpa [#allocation6], 0
    %16 = vsyncpa [#allocation9], 0
    %17 = vsyncpa [#allocation4], 0
    // Predicated region
    $region2: #{_mlp_forward.1} parent=1 // pred_check
      _
    $region3: #{_mlp_forward.1} parent=1 // pred_check_branch
      %19 = sbr.rel (0) target = $region5
    $region4: #{_mlp_forward.1} parent=1 // pred_region
      _
    $region5: #{_mlp_forward.1} parent=1 // pred_fallthru
      _
    // Predicated region
    $region6: #{_mlp_forward.1} parent=1 // pred_check
      _
    $region7: #{_mlp_forward.1} parent=1 // pred_check_branch
      %21 = sbr.rel (0) target = $region9
    $region8: #{_mlp_forward.1} parent=1 // pred_region
      %23 = vsyncadd [#allocation3], 0
      %s24 = sshll.u32 %s1, 4
      %s25 = int_to_ptr.hbm [resolvable:$true] %s24
      %s26 = sshll.u32 [#allocation2], 4
      %s27 = int_to_ptr.vmem [resolvable:$true] %s26
      %32 = dma.hbm_to_vmem [thread:$0]  %s25, 1024, %s27, [#allocation3], 64, 64, 4
    $region9: #{_mlp_forward.1} parent=1 // pred_fallthru
      _
    // Predicated region
    $region10: #{_mlp_forward.1} parent=1 // pred_check
      _
    $region11: #{_mlp_forward.1} parent=1 // pred_check_branch
      %34 = sbr.rel (0) target = $region13
    $region12: #{_mlp_forward.1} parent=1 // pred_region
      _
    $region13: #{_mlp_forward.1} parent=1 // pred_fallthru
      _
    // Predicated region
    $region14: #{_mlp_forward.1} parent=1 // pred_check
      _
    $region15: #{_mlp_forward.1} parent=1 // pred_check_branch
      %36 = sbr.rel (0) target = $region17
    $region16: #{_mlp_forward.1} parent=1 // pred_region
      %38 = vsyncadd [#allocation6], 0
      %s39 = sshll.u32 %s3, 4
      %s40 = int_to_ptr.hbm [resolvable:$true] %s39
      %s41 = sshll.u32 [#allocation5], 4
      %s42 = int_to_ptr.vmem [resolvable:$true] %s41
      %47 = dma.hbm_to_vmem [thread:$0]  %s40, 1024, %s42, [#allocation6], 64, 64, 4
    $region17: #{_mlp_forward.1} parent=1 // pred_fallthru
      _
    // Predicated region
    $region18: #{_mlp_forward.1} parent=1 // pred_check
      _
    $region19: #{_mlp_forward.1} parent=1 // pred_check_branch
      %49 = sbr.rel (0) target = $region21
    $region20: #{_mlp_forward.1} parent=1 // pred_region
      _
    $region21: #{_mlp_forward.1} parent=1 // pred_fallthru
      _
    // Predicated region
    $region22: #{_mlp_forward.1} parent=1 // pred_check
      _
    $region23: #{_mlp_forward.1} parent=1 // pred_check_branch
      %51 = sbr.rel (0) target = $region25
    $region24: #{_mlp_forward.1} parent=1 // pred_region
      %53 = vsyncadd [#allocation6], 0
      %s54 = sshll.u32 %s5, 4
      %s55 = int_to_ptr.hbm [resolvable:$true] %s54
      %s56 = sshll.u32 [#allocation7], 4
      %s57 = int_to_ptr.vmem [resolvable:$true] %s56
      %62 = dma.hbm_to_vmem [thread:$0]  %s55, 1024, %s57, [#allocation6], 64, 64, 4
    $region25: #{_mlp_forward.1} parent=1 // pred_fallthru
      _
    // Predicated region
    $region26: #{_mlp_forward.1} parent=1 // pred_check
      _
    $region27: #{_mlp_forward.1} parent=1 // pred_check_branch
      %64 = sbr.rel (0) target = $region29
    $region28: #{_mlp_forward.1} parent=1 // pred_region
      _
    $region29: #{_mlp_forward.1} parent=1 // pred_fallthru
      _
    // Predicated region
    $region30: #{_mlp_forward.1} parent=1 // pred_check
      _
    $region31: #{_mlp_forward.1} parent=1 // pred_check_branch
      %66 = sbr.rel (0) target = $region33
    $region32: #{_mlp_forward.1} parent=1 // pred_region
      %68 = vsyncadd [#allocation9], 0
      %s69 = sshll.u32 %s7, 4
      %s70 = int_to_ptr.hbm [resolvable:$true] %s69
      %s71 = sshll.u32 [#allocation8], 4
      %s72 = int_to_ptr.vmem [resolvable:$true] %s71
      %77 = dma.hbm_to_vmem [thread:$0]  %s70, 1024, %s72, [#allocation9], 64, 64, 4
    $region33: #{_mlp_forward.1} parent=1 // pred_fallthru
      _
    // Predicated region
    $region34: #{_mlp_forward.1} parent=1 // pred_check
      _
    $region35: #{_mlp_forward.1} parent=1 // pred_check_branch
      %79 = sbr.rel (0) target = $region37
    $region36: #{_mlp_forward.1} parent=1 // pred_region
      _
    $region37: #{_mlp_forward.1} parent=1 // pred_fallthru
      _
    // Predicated region
    $region38: #{_mlp_forward.1} parent=1 // pred_check
      _
    $region39: #{_mlp_forward.1} parent=1 // pred_check_branch
      %81 = sbr.rel (0) target = $region41
    $region40: #{_mlp_forward.1} parent=1 // pred_region
      %83 = dma.done [#allocation3], 1024
    $region41: #{_mlp_forward.1} parent=1 // pred_fallthru
      _
    // Predicated region
    $region42: #{_mlp_forward.1} parent=1 // pred_check
      _
    $region43: #{_mlp_forward.1} parent=1 // pred_check_branch
      %85 = sbr.rel (0) target = $region45
    $region44: #{_mlp_forward.1} parent=1 // pred_region
      %87 = dma.done [#allocation6], 1024
    $region45: #{_mlp_forward.1} parent=1 // pred_fallthru
      _
    // Predicated region
    $region46: #{_mlp_forward.1} parent=1 // pred_check
      _
    $region47: #{_mlp_forward.1} parent=1 // pred_check_branch
      %89 = sbr.rel (0) target = $region49
    $region48: #{_mlp_forward.1} parent=1 // pred_region
      %91 = dma.done [#allocation6], 1024
    $region49: #{_mlp_forward.1} parent=1 // pred_fallthru
      _
    // Predicated region
    $region50: #{_mlp_forward.1} parent=1 // pred_check
      _
    $region51: #{_mlp_forward.1} parent=1 // pred_check_branch
      %93 = sbr.rel (0) target = $region53
    $region52: #{_mlp_forward.1} parent=1 // pred_region
      %95 = dma.done [#allocation9], 1024
    $region53: #{_mlp_forward.1} parent=1 // pred_fallthru
      _
    %v96 = vld [vmem:[%s0] sm:$0xff]
    %v97 = vpack.c.bf16 %v96, %v96
    %v98 = vld [vmem:[#allocation2] sm:$0xf]
    %v99 = vld [vmem:[#allocation2 + $0x4] sm:$0xf]
    %v100 = vld [vmem:[#allocation2 + $0x8] sm:$0xf]
    %v101 = vld [vmem:[#allocation2 + $0xc] sm:$0xf]
    %v102 = vld [vmem:[#allocation2 + $0x10] sm:$0xf]
    %v103 = vld [vmem:[#allocation2 + $0x14] sm:$0xf]
    %v104 = vld [vmem:[#allocation2 + $0x18] sm:$0xf]
    %v105 = vld [vmem:[#allocation2 + $0x1c] sm:$0xf]
    %v106 = vld [vmem:[#allocation2 + $0x20] sm:$0xf]
    %v107 = vld [vmem:[#allocation2 + $0x24] sm:$0xf]
    %v108 = vld [vmem:[#allocation2 + $0x28] sm:$0xf]
    %v109 = vld [vmem:[#allocation2 + $0x2c] sm:$0xf]
    %v110 = vld [vmem:[#allocation2 + $0x30] sm:$0xf]
    %v111 = vld [vmem:[#allocation2 + $0x34] sm:$0xf]
    %v112 = vld [vmem:[#allocation2 + $0x38] sm:$0xf]
    %v113 = vld [vmem:[#allocation2 + $0x3c] sm:$0xf]
    %v114 = vld [vmem:[%s2] sm:$0x1]
    %v116 = vperm.slane %v114, 0
    %v134 = vunpack.c.l.b16 %v98
    %v135 = vunpack.c.l.b16 %v99
    %v136 = vunpack.c.l.b16 %v100
    %v137 = vunpack.c.l.b16 %v101
    %v138 = vunpack.c.l.b16 %v102
    %v139 = vunpack.c.l.b16 %v103
    %v140 = vunpack.c.l.b16 %v104
    %v141 = vunpack.c.l.b16 %v105
    %v142 = vunpack.c.l.b16 %v106
    %v143 = vunpack.c.l.b16 %v107
    %v144 = vunpack.c.l.b16 %v108
    %v145 = vunpack.c.l.b16 %v109
    %v146 = vunpack.c.l.b16 %v110
    %v147 = vunpack.c.l.b16 %v111
    %v148 = vunpack.c.l.b16 %v112
    %v149 = vunpack.c.l.b16 %v113
    %v150 = vpack.c.b16 %v135, %v134
    %v151 = vpack.c.b16 %v137, %v136
    %v152 = vpack.c.b16 %v139, %v138
    %v153 = vpack.c.b16 %v141, %v140
    %v154 = vpack.c.b16 %v143, %v142
    %v155 = vpack.c.b16 %v145, %v144
    %v156 = vpack.c.b16 %v147, %v146
    %v157 = vpack.c.b16 %v149, %v148
    %166 = vmatpush.bf16.msra.mxu0 %v157
    %167 = vmatpush.bf16.msra.mxu0 %v156
    %168 = vmatpush.bf16.msra.mxu0 %v155
    %169 = vmatpush.bf16.msra.mxu0 %v154
    %170 = vmatpush.bf16.msra.mxu0 %v153
    %171 = vmatpush.bf16.msra.mxu0 %v152
    %172 = vmatpush.bf16.msra.mxu0 %v151
    %173 = vmatpush.bf16.msra.mxu0 %v150
    %174 = vmatmul.bf16.gmra.mxu0 %v97
    %v175 = vpop.f32.mrf.mxu0
    %v176 = vadd.f32 %v116, %v175
    %v177 = vpop.f32.mrf.mxu0
    %178 = vdwg.mxu0
    %v179 = vmax.f32 %v176, 0.0
    %v180 = vpack.c.bf16 %v179, %v179
    %v181 = vld [vmem:[#allocation5] sm:$0xf]
    %v182 = vld [vmem:[#allocation5 + $0x4] sm:$0xf]
    %v183 = vld [vmem:[#allocation5 + $0x8] sm:$0xf]
    %v184 = vld [vmem:[#allocation5 + $0xc] sm:$0xf]
    %v185 = vld [vmem:[#allocation5 + $0x10] sm:$0xf]
    %v186 = vld [vmem:[#allocation5 + $0x14] sm:$0xf]
    %v187 = vld [vmem:[#allocation5 + $0x18] sm:$0xf]
    %v188 = vld [vmem:[#allocation5 + $0x1c] sm:$0xf]
    %v189 = vld [vmem:[#allocation5 + $0x20] sm:$0xf]
    %v190 = vld [vmem:[#allocation5 + $0x24] sm:$0xf]
    %v191 = vld [vmem:[#allocation5 + $0x28] sm:$0xf]
    %v192 = vld [vmem:[#allocation5 + $0x2c] sm:$0xf]
    %v193 = vld [vmem:[#allocation5 + $0x30] sm:$0xf]
    %v194 = vld [vmem:[#allocation5 + $0x34] sm:$0xf]
    %v195 = vld [vmem:[#allocation5 + $0x38] sm:$0xf]
    %v196 = vld [vmem:[#allocation5 + $0x3c] sm:$0xf]
    %v197 = vld [vmem:[%s4] sm:$0x1]
    %v199 = vperm.slane %v197, 0
    %v217 = vunpack.c.l.b16 %v181
    %v218 = vunpack.c.l.b16 %v182
    %v219 = vunpack.c.l.b16 %v183
    %v220 = vunpack.c.l.b16 %v184
    %v221 = vunpack.c.l.b16 %v185
    %v222 = vunpack.c.l.b16 %v186
    %v223 = vunpack.c.l.b16 %v187
    %v224 = vunpack.c.l.b16 %v188
    %v225 = vunpack.c.l.b16 %v189
    %v226 = vunpack.c.l.b16 %v190
    %v227 = vunpack.c.l.b16 %v191
    %v228 = vunpack.c.l.b16 %v192
    %v229 = vunpack.c.l.b16 %v193
    %v230 = vunpack.c.l.b16 %v194
    %v231 = vunpack.c.l.b16 %v195
    %v232 = vunpack.c.l.b16 %v196
    %v233 = vpack.c.b16 %v218, %v217
    %v234 = vpack.c.b16 %v220, %v219
    %v235 = vpack.c.b16 %v222, %v221
    %v236 = vpack.c.b16 %v224, %v223
    %v237 = vpack.c.b16 %v226, %v225
    %v238 = vpack.c.b16 %v228, %v227
    %v239 = vpack.c.b16 %v230, %v229
    %v240 = vpack.c.b16 %v232, %v231
    %249 = vmatpush.bf16.msra.mxu0 %v240
    %250 = vmatpush.bf16.msra.mxu0 %v239
    %251 = vmatpush.bf16.msra.mxu0 %v238
    %252 = vmatpush.bf16.msra.mxu0 %v237
    %253 = vmatpush.bf16.msra.mxu0 %v236
    %254 = vmatpush.bf16.msra.mxu0 %v235
    %255 = vmatpush.bf16.msra.mxu0 %v234
    %256 = vmatpush.bf16.msra.mxu0 %v233
    %257 = vmatmul.bf16.gmra.mxu0 %v180
    %v258 = vpop.f32.mrf.mxu0
    %v259 = vadd.f32 %v199, %v258
    %v260 = vpop.f32.mrf.mxu0
    %261 = vdwg.mxu0
    %v262 = vmax.f32 %v259, 0.0
    %v263 = vpack.c.bf16 %v262, %v262
    %v264 = vld [vmem:[#allocation7] sm:$0xf]
    %v265 = vld [vmem:[#allocation7 + $0x4] sm:$0xf]
    %v266 = vld [vmem:[#allocation7 + $0x8] sm:$0xf]
    %v267 = vld [vmem:[#allocation7 + $0xc] sm:$0xf]
    %v268 = vld [vmem:[#allocation7 + $0x10] sm:$0xf]
    %v269 = vld [vmem:[#allocation7 + $0x14] sm:$0xf]
    %v270 = vld [vmem:[#allocation7 + $0x18] sm:$0xf]
    %v271 = vld [vmem:[#allocation7 + $0x1c] sm:$0xf]
    %v272 = vld [vmem:[#allocation7 + $0x20] sm:$0xf]
    %v273 = vld [vmem:[#allocation7 + $0x24] sm:$0xf]
    %v274 = vld [vmem:[#allocation7 + $0x28] sm:$0xf]
    %v275 = vld [vmem:[#allocation7 + $0x2c] sm:$0xf]
    %v276 = vld [vmem:[#allocation7 + $0x30] sm:$0xf]
    %v277 = vld [vmem:[#allocation7 + $0x34] sm:$0xf]
    %v278 = vld [vmem:[#allocation7 + $0x38] sm:$0xf]
    %v279 = vld [vmem:[#allocation7 + $0x3c] sm:$0xf]
    %v280 = vld [vmem:[%s6] sm:$0x1]
    %v282 = vperm.slane %v280, 0
    %v300 = vunpack.c.l.b16 %v264
    %v301 = vunpack.c.l.b16 %v265
    %v302 = vunpack.c.l.b16 %v266
    %v303 = vunpack.c.l.b16 %v267
    %v304 = vunpack.c.l.b16 %v268
    %v305 = vunpack.c.l.b16 %v269
    %v306 = vunpack.c.l.b16 %v270
    %v307 = vunpack.c.l.b16 %v271
    %v308 = vunpack.c.l.b16 %v272
    %v309 = vunpack.c.l.b16 %v273
    %v310 = vunpack.c.l.b16 %v274
    %v311 = vunpack.c.l.b16 %v275
    %v312 = vunpack.c.l.b16 %v276
    %v313 = vunpack.c.l.b16 %v277
    %v314 = vunpack.c.l.b16 %v278
    %v315 = vunpack.c.l.b16 %v279
    %v316 = vpack.c.b16 %v301, %v300
    %v317 = vpack.c.b16 %v303, %v302
    %v318 = vpack.c.b16 %v305, %v304
    %v319 = vpack.c.b16 %v307, %v306
    %v320 = vpack.c.b16 %v309, %v308
    %v321 = vpack.c.b16 %v311, %v310
    %v322 = vpack.c.b16 %v313, %v312
    %v323 = vpack.c.b16 %v315, %v314
    %332 = vmatpush.bf16.msra.mxu0 %v323
    %333 = vmatpush.bf16.msra.mxu0 %v322
    %334 = vmatpush.bf16.msra.mxu0 %v321
    %335 = vmatpush.bf16.msra.mxu0 %v320
    %336 = vmatpush.bf16.msra.mxu0 %v319
    %337 = vmatpush.bf16.msra.mxu0 %v318
    %338 = vmatpush.bf16.msra.mxu0 %v317
    %339 = vmatpush.bf16.msra.mxu0 %v316
    %340 = vmatmul.bf16.gmra.mxu0 %v263
    %v341 = vpop.f32.mrf.mxu0
    %v342 = vadd.f32 %v282, %v341
    %v343 = vpop.f32.mrf.mxu0
    %344 = vdwg.mxu0
    %v345 = vmax.f32 %v342, 0.0
    %v346 = vpack.c.bf16 %v345, %v345
    %v347 = vld [vmem:[#allocation8] sm:$0xf]
    %v348 = vld [vmem:[#allocation8 + $0x4] sm:$0xf]
    %v349 = vld [vmem:[#allocation8 + $0x8] sm:$0xf]
    %v350 = vld [vmem:[#allocation8 + $0xc] sm:$0xf]
    %v351 = vld [vmem:[#allocation8 + $0x10] sm:$0xf]
    %v352 = vld [vmem:[#allocation8 + $0x14] sm:$0xf]
    %v353 = vld [vmem:[#allocation8 + $0x18] sm:$0xf]
    %v354 = vld [vmem:[#allocation8 + $0x1c] sm:$0xf]
    %v355 = vld [vmem:[#allocation8 + $0x20] sm:$0xf]
    %v356 = vld [vmem:[#allocation8 + $0x24] sm:$0xf]
    %v357 = vld [vmem:[#allocation8 + $0x28] sm:$0xf]
    %v358 = vld [vmem:[#allocation8 + $0x2c] sm:$0xf]
    %v359 = vld [vmem:[#allocation8 + $0x30] sm:$0xf]
    %v360 = vld [vmem:[#allocation8 + $0x34] sm:$0xf]
    %v361 = vld [vmem:[#allocation8 + $0x38] sm:$0xf]
    %v362 = vld [vmem:[#allocation8 + $0x3c] sm:$0xf]
    %v363 = vld [vmem:[%s8] sm:$0x1]
    %v365 = vperm.slane %v363, 0
    %v383 = vunpack.c.l.b16 %v347
    %v384 = vunpack.c.l.b16 %v348
    %v385 = vunpack.c.l.b16 %v349
    %v386 = vunpack.c.l.b16 %v350
    %v387 = vunpack.c.l.b16 %v351
    %v388 = vunpack.c.l.b16 %v352
    %v389 = vunpack.c.l.b16 %v353
    %v390 = vunpack.c.l.b16 %v354
    %v391 = vunpack.c.l.b16 %v355
    %v392 = vunpack.c.l.b16 %v356
    %v393 = vunpack.c.l.b16 %v357
    %v394 = vunpack.c.l.b16 %v358
    %v395 = vunpack.c.l.b16 %v359
    %v396 = vunpack.c.l.b16 %v360
    %v397 = vunpack.c.l.b16 %v361
    %v398 = vunpack.c.l.b16 %v362
    %v399 = vpack.c.b16 %v384, %v383
    %v400 = vpack.c.b16 %v386, %v385
    %v401 = vpack.c.b16 %v388, %v387
    %v402 = vpack.c.b16 %v390, %v389
    %v403 = vpack.c.b16 %v392, %v391
    %v404 = vpack.c.b16 %v394, %v393
    %v405 = vpack.c.b16 %v396, %v395
    %v406 = vpack.c.b16 %v398, %v397
    %415 = vmatpush.bf16.msra.mxu0 %v406
    %416 = vmatpush.bf16.msra.mxu0 %v405
    %417 = vmatpush.bf16.msra.mxu0 %v404
    %418 = vmatpush.bf16.msra.mxu0 %v403
    %419 = vmatpush.bf16.msra.mxu0 %v402
    %420 = vmatpush.bf16.msra.mxu0 %v401
    %421 = vmatpush.bf16.msra.mxu0 %v400
    %422 = vmatpush.bf16.msra.mxu0 %v399
    %423 = vmatmul.bf16.gmra.mxu0 %v346
    %v424 = vpop.f32.mrf.mxu0
    %v425 = vadd.f32 %v365, %v424
    %v426 = vpop.f32.mrf.mxu0
    %427 = vdwg.mxu0
    %v428 = vsub.f32 0.0, %v425
    %v429 = vmul.f32 %v428, 1.442695
    %v430 = vpow.pop %v429
    %v431 = vadd.f32 %v430, 1.0
    %v432 = vrcp.pop %v431
    %433 = vst [vmem:[#allocation10] sm:$0xff] %v432
    // Predicated region
    $region54: #{_mlp_forward.1} parent=1 // pred_check
      _
    $region55: #{_mlp_forward.1} parent=1 // pred_check_branch
      %435 = sbr.rel (0) target = $region57
    $region56: #{_mlp_forward.1} parent=1 // pred_region
      %437 = vsyncadd [#allocation4], 0
      %s439 = sshll.u32 [#allocation10], 4
      %s440 = int_to_ptr.vmem [resolvable:$true] %s439
      %s441 = sshll.u32 %s9, 4
      %s442 = int_to_ptr.hbm [resolvable:$true] %s441
      %444 = dma.vmem_to_hbm [thread:$0]  %s440, 128, %s442, [#allocation4]
    $region57: #{_mlp_forward.1} parent=1 // pred_fallthru
      _
    // Predicated region
    $region58: #{_mlp_forward.1} parent=1 // pred_check
      _
    $region59: #{_mlp_forward.1} parent=1 // pred_check_branch
      %446 = sbr.rel (0) target = $region61
    $region60: #{_mlp_forward.1} parent=1 // pred_region
      %448 = dma.done [#allocation4], 128
    $region61: #{_mlp_forward.1} parent=1 // pred_fallthru
      _
    %449 = vsyncpa [#allocation3], 1
    %450 = vsyncpa [#allocation6], 1
    %451 = vsyncpa [#allocation9], 1
    %452 = vsyncpa [#allocation4], 1

</llo_original>
